<compile_context>
chip_gen: v6e
topology: v6e:2x2x1
jax: 0.10.0
libtpu: 0.0.40
codegen_flags: <defaults>
</compile_context>

<pallas_src>
import jax
import jax.numpy as jnp
from jax.experimental import pallas as pl
from jax.experimental.pallas import tpu as pltpu


def _make_audio_att_kernel(n_layers):
    """Builds the fused kernel for a conv stack of `n_layers` layers (statically unrolled)."""

    def kernel(*refs):
        # refs = (x, w_conv[0..n-1], b_conv[0..n-1], w_lin, b_lin, out)
        x_ref = refs[0]
        w_refs = refs[1:1 + n_layers]                      # each (3*C_in, C_out)
        b_refs = refs[1 + n_layers:1 + 2 * n_layers]       # each (1, C_out)
        wlin_ref = refs[1 + 2 * n_layers]                  # (L, L)  torch layout (out, in)
        blin_ref = refs[2 + 2 * n_layers]                  # (L, 1)
        o_ref = refs[3 + 2 * n_layers]                     # (1, D)

        x = x_ref[...]                                     # (L, D) f32, sequence-major
        L = x.shape[0]

        # Row masks for the zero ("same") padding at the two sequence edges (built once).
        t_col = jax.lax.broadcasted_iota(jnp.int32, (L, 1), 0)
        is_first = t_col == 0                              # (L, 1) bool
        is_last = t_col == L - 1                           # (L, 1) bool

        # attentionConvNet: 5x [Conv1d(k=3, stride=1, padding=1, bias) + LeakyReLU(0.02)].
        # Each layer = ONE MXU matmul on lane-concatenated taps [h[t-1] | h[t] | h[t+1]].
        h = x                                              # (L, C_in), C_in starts at D
        for i in range(n_layers):                          # static unroll
            # Temporal shifts on the XLU (sublane rotate), then zero the wrapped edge row.
            h_prev = jnp.where(is_first, 0.0, pltpu.roll(h, shift=1, axis=0))      # h[t-1]
            h_next = jnp.where(is_last, 0.0, pltpu.roll(h, shift=L - 1, axis=0))   # h[t+1]
            h_cat = jnp.concatenate([h_prev, h, h_next], axis=1)                   # (L, 3*C_in)
            z = jnp.dot(h_cat, w_refs[i][...],
                        preferred_element_type=jnp.float32) + b_refs[i][...]       # (L, C_out)
            h = jnp.where(z >= 0.0, z, 0.02 * z)                                   # LeakyReLU(0.02)

        # Last layer has a single real output channel -> h is (L, 1) == y.view(1, seq_len)^T.
        feat = h                                                                   # (L, 1)

        # attentionNet: Linear(seq_len -> seq_len) + Softmax over the sequence axis.
        scores = jnp.dot(wlin_ref[...], feat,
                         preferred_element_type=jnp.float32) + blin_ref[...]       # (L, 1)
        scores = scores - jnp.max(scores, axis=0, keepdims=True)
        e = jnp.exp(scores)
        att = e / jnp.sum(e, axis=0, keepdims=True)                                # (L, 1)

        # torch.sum(att * x, dim=1) -> one lane-dense (1, D) row store.
        o_ref[...] = jnp.sum(att * x, axis=0, keepdims=True).astype(o_ref.dtype)

    return kernel


def pack_audio_att_params(conv_ws, conv_bs, lin_w, lin_b):
    """One-time packing of torch-layout AudioAttNet parameters for the kernel.

    conv_ws[i]: (C_out, C_in, 3) torch Conv1d weight ; conv_bs[i]: (C_out,)
    lin_w:      (seq_len, seq_len) torch Linear weight (out, in) ; lin_b: (seq_len,)

    Do this ONCE at parameter-load time, not per forward call.
    """
    packed_w, packed_b = [], []
    for w, b in zip(conv_ws, conv_bs):
        c_out, c_in, k = w.shape
        assert k == 3
        # (C_out, C_in, 3) -> (3, C_in, C_out) -> (3*C_in, C_out); the three row blocks are
        # the taps for [x[t-1], x[t], x[t+1]], matching the kernel's lane-concatenated taps.
        packed_w.append(jnp.transpose(w.astype(jnp.float32), (2, 1, 0)).reshape(3 * c_in, c_out))
        packed_b.append(b.astype(jnp.float32).reshape(1, c_out))
    seq_len = lin_w.shape[0]
    wlin = lin_w.astype(jnp.float32)                          # (L, L), used as scores = W @ feat
    blin_col = lin_b.astype(jnp.float32).reshape(seq_len, 1)  # (L, 1)
    return tuple(packed_w), tuple(packed_b), wlin, blin_col


def audio_att_net(x, packed_conv_ws, packed_conv_bs, lin_w, lin_b_col):
    """AudioAttNet forward. x: (1, seq_len, dim_aud) f32; params from pack_audio_att_params."""
    b, seq_len, dim_aud = x.shape
    assert b == 1, "AudioAttNet forward operates on a single sequence window (batch == 1)"
    n_layers = len(packed_conv_ws)
    x2d = x.reshape(seq_len, dim_aud).astype(jnp.float32)     # (L, D)

    vmem = pl.BlockSpec(memory_space=pltpu.MemorySpace.VMEM)
    n_in = 1 + 2 * n_layers + 2
    return pl.pallas_call(
        _make_audio_att_kernel(n_layers),
        out_shape=jax.ShapeDtypeStruct((1, dim_aud), jnp.float32),
        in_specs=[vmem] * n_in,
        out_specs=vmem,
    )(x2d, *packed_conv_ws, *packed_conv_bs, lin_w, lin_b_col)


def _reference(x, conv_ws, conv_bs, lin_w, lin_b):
    """Pure-JAX reference matching the PyTorch module."""
    y = jnp.transpose(x, (0, 2, 1))                           # (1, dim_aud, seq_len)
    for w, b in zip(conv_ws, conv_bs):
        y = jax.lax.conv_general_dilated(
            y, w, window_strides=(1,), padding=[(1, 1)],
            dimension_numbers=("NCH", "OIH", "NCH"),
            precision=jax.lax.Precision.HIGHEST)
        y = y + b.reshape(1, -1, 1)
        y = jnp.where(y >= 0, y, 0.02 * y)                    # LeakyReLU(0.02)
    s = y.reshape(1, -1)                                      # (1, seq_len)
    s = s @ lin_w.T + lin_b.reshape(1, -1)
    att = jax.nn.softmax(s, axis=1).reshape(1, -1, 1)         # (1, seq_len, 1)
    return jnp.sum(att * x, axis=1)                           # (1, dim_aud)


if __name__ == "__main__":
    DIM_AUD, SEQ_LEN = 64, 8          # module defaults
    chans = [DIM_AUD, 16, 8, 4, 2, 1]

    key = jax.random.PRNGKey(0)
    keys = jax.random.split(key, 13)

    conv_ws, conv_bs = [], []
    ki = 0
    for i in range(5):
        c_in, c_out = chans[i], chans[i + 1]
        fan_in = c_in * 3
        conv_ws.append(jax.random.normal(keys[ki], (c_out, c_in, 3), jnp.float32)
                       / jnp.sqrt(jnp.float32(fan_in)))
        ki += 1
        conv_bs.append(0.1 * jax.random.normal(keys[ki], (c_out,), jnp.float32))
        ki += 1
    lin_w = jax.random.normal(keys[ki], (SEQ_LEN, SEQ_LEN), jnp.float32) / jnp.sqrt(
        jnp.float32(SEQ_LEN))
    ki += 1
    lin_b = 0.1 * jax.random.normal(keys[ki], (SEQ_LEN,), jnp.float32)
    ki += 1
    x = jax.random.normal(keys[ki], (1, SEQ_LEN, DIM_AUD), jnp.float32)

    # One-time packing (hot path per call is just the kernel + a trivial x reshape).
    packed_ws, packed_bs, wlin, blin_col = pack_audio_att_params(conv_ws, conv_bs, lin_w, lin_b)

    fwd = jax.jit(audio_att_net)
    out = jax.block_until_ready(fwd(x, packed_ws, packed_bs, wlin, blin_col))

    ref = _reference(x, conv_ws, conv_bs, lin_w, lin_b)
    assert out.shape == (1, DIM_AUD)
    max_err = float(jnp.max(jnp.abs(out - ref)))
    assert jnp.allclose(out, ref, atol=1e-3, rtol=1e-3), max_err

    print("KERNEL_OK")
</pallas_src>

<mosaic_0001>
module attributes {stable_mosaic.version = 11 : i64} {
  func.func @kernel(%arg0: memref<8x64xf32, #tpu.memory_space<vmem>>, %arg1: memref<192x16xf32, #tpu.memory_space<vmem>>, %arg2: memref<48x8xf32, #tpu.memory_space<vmem>>, %arg3: memref<24x4xf32, #tpu.memory_space<vmem>>, %arg4: memref<12x2xf32, #tpu.memory_space<vmem>>, %arg5: memref<6x1xf32, #tpu.memory_space<vmem>>, %arg6: memref<1x16xf32, #tpu.memory_space<vmem>>, %arg7: memref<1x8xf32, #tpu.memory_space<vmem>>, %arg8: memref<1x4xf32, #tpu.memory_space<vmem>>, %arg9: memref<1x2xf32, #tpu.memory_space<vmem>>, %arg10: memref<1x1xf32, #tpu.memory_space<vmem>>, %arg11: memref<8x8xf32, #tpu.memory_space<vmem>>, %arg12: memref<8x1xf32, #tpu.memory_space<vmem>>, %arg13: memref<1x64xf32, #tpu.memory_space<vmem>>) attributes {dimension_semantics = [], scalar_prefetch = 0 : i64, scratch_operands = 0 : i64, tpu.core_type = #tpu.core_type<tc>} {
    %c0 = arith.constant 0 : index
    %c0_0 = arith.constant 0 : index
    %0 = vector.load %arg0[%c0, %c0_0] : memref<8x64xf32, #tpu.memory_space<vmem>>, vector<8x64xf32>
    %1 = tpu.iota {dimensions = array<i32: 0>} : vector<8x1xi32>
    %c0_i32 = arith.constant 0 : i32
    %2 = vector.broadcast %c0_i32 : i32 to vector<8x1xi32>
    %3 = arith.cmpi eq, %1, %2 : vector<8x1xi32>
    %c7_i32 = arith.constant 7 : i32
    %4 = vector.broadcast %c7_i32 : i32 to vector<8x1xi32>
    %5 = arith.cmpi eq, %1, %4 : vector<8x1xi32>
    %c1_i32 = arith.constant 1 : i32
    %6 = tpu.dynamic_rotate %0 by %c1_i32 dim 0 : vector<8x64xf32>, i32 -> vector<8x64xf32>
    %cst = arith.constant 0.000000e+00 : f32
    %7 = vector.shape_cast %3 : vector<8x1xi1> to vector<8x1xi1>
    %8 = vector.broadcast %7 : vector<8x1xi1> to vector<8x64xi1>
    %9 = vector.broadcast %cst : f32 to vector<8x64xf32>
    %10 = arith.select %8, %9, %6 : vector<8x64xi1>, vector<8x64xf32>
    %c7_i32_1 = arith.constant 7 : i32
    %11 = tpu.dynamic_rotate %0 by %c7_i32_1 dim 0 : vector<8x64xf32>, i32 -> vector<8x64xf32>
    %cst_2 = arith.constant 0.000000e+00 : f32
    %12 = vector.shape_cast %5 : vector<8x1xi1> to vector<8x1xi1>
    %13 = vector.broadcast %12 : vector<8x1xi1> to vector<8x64xi1>
    %14 = vector.broadcast %cst_2 : f32 to vector<8x64xf32>
    %15 = arith.select %13, %14, %11 : vector<8x64xi1>, vector<8x64xf32>
    %16 = tpu.concatenate %10, %0, %15 in 1 : vector<8x64xf32>, vector<8x64xf32>, vector<8x64xf32> -> vector<8x192xf32>
    %c0_3 = arith.constant 0 : index
    %c0_4 = arith.constant 0 : index
    %17 = vector.load %arg1[%c0_3, %c0_4] : memref<192x16xf32, #tpu.memory_space<vmem>>, vector<192x16xf32>
    %cst_5 = arith.constant dense<0.000000e+00> : vector<8x16xf32>
    %18 = tpu.matmul %16, %17, %cst_5 {dimension_numbers = #tpu.dot_dimension_numbers<[1], [0], [0], [1], [0, 0, 1, 1], [], []>} : vector<8x192xf32>, vector<192x16xf32>, vector<8x16xf32> -> vector<8x16xf32>
    %c0_6 = arith.constant 0 : index
    %c0_7 = arith.constant 0 : index
    %19 = vector.load %arg6[%c0_6, %c0_7] : memref<1x16xf32, #tpu.memory_space<vmem>>, vector<1x16xf32>
    %20 = vector.broadcast %19 : vector<1x16xf32> to vector<8x16xf32>
    %21 = arith.addf %18, %20 : vector<8x16xf32>
    %cst_8 = arith.constant 0.000000e+00 : f32
    %22 = vector.broadcast %cst_8 : f32 to vector<8x16xf32>
    %23 = arith.cmpf oge, %21, %22 : vector<8x16xf32>
    %cst_9 = arith.constant 2.000000e-02 : f32
    %24 = vector.broadcast %cst_9 : f32 to vector<8x16xf32>
    %25 = arith.mulf %24, %21 : vector<8x16xf32>
    %26 = arith.select %23, %21, %25 : vector<8x16xi1>, vector<8x16xf32>
    %c1_i32_10 = arith.constant 1 : i32
    %27 = tpu.dynamic_rotate %26 by %c1_i32_10 dim 0 : vector<8x16xf32>, i32 -> vector<8x16xf32>
    %cst_11 = arith.constant 0.000000e+00 : f32
    %28 = vector.shape_cast %3 : vector<8x1xi1> to vector<8x1xi1>
    %29 = vector.broadcast %28 : vector<8x1xi1> to vector<8x16xi1>
    %30 = vector.broadcast %cst_11 : f32 to vector<8x16xf32>
    %31 = arith.select %29, %30, %27 : vector<8x16xi1>, vector<8x16xf32>
    %c7_i32_12 = arith.constant 7 : i32
    %32 = tpu.dynamic_rotate %26 by %c7_i32_12 dim 0 : vector<8x16xf32>, i32 -> vector<8x16xf32>
    %cst_13 = arith.constant 0.000000e+00 : f32
    %33 = vector.shape_cast %5 : vector<8x1xi1> to vector<8x1xi1>
    %34 = vector.broadcast %33 : vector<8x1xi1> to vector<8x16xi1>
    %35 = vector.broadcast %cst_13 : f32 to vector<8x16xf32>
    %36 = arith.select %34, %35, %32 : vector<8x16xi1>, vector<8x16xf32>
    %37 = tpu.concatenate %31, %26, %36 in 1 : vector<8x16xf32>, vector<8x16xf32>, vector<8x16xf32> -> vector<8x48xf32>
    %c0_14 = arith.constant 0 : index
    %c0_15 = arith.constant 0 : index
    %38 = vector.load %arg2[%c0_14, %c0_15] : memref<48x8xf32, #tpu.memory_space<vmem>>, vector<48x8xf32>
    %cst_16 = arith.constant dense<0.000000e+00> : vector<8x8xf32>
    %39 = tpu.matmul %37, %38, %cst_16 {dimension_numbers = #tpu.dot_dimension_numbers<[1], [0], [0], [1], [0, 0, 1, 1], [], []>} : vector<8x48xf32>, vector<48x8xf32>, vector<8x8xf32> -> vector<8x8xf32>
    %c0_17 = arith.constant 0 : index
    %c0_18 = arith.constant 0 : index
    %40 = vector.load %arg7[%c0_17, %c0_18] : memref<1x8xf32, #tpu.memory_space<vmem>>, vector<1x8xf32>
    %41 = vector.broadcast %40 : vector<1x8xf32> to vector<8x8xf32>
    %42 = arith.addf %39, %41 : vector<8x8xf32>
    %cst_19 = arith.constant 0.000000e+00 : f32
    %43 = vector.broadcast %cst_19 : f32 to vector<8x8xf32>
    %44 = arith.cmpf oge, %42, %43 : vector<8x8xf32>
    %cst_20 = arith.constant 2.000000e-02 : f32
    %45 = vector.broadcast %cst_20 : f32 to vector<8x8xf32>
    %46 = arith.mulf %45, %42 : vector<8x8xf32>
    %47 = arith.select %44, %42, %46 : vector<8x8xi1>, vector<8x8xf32>
    %c1_i32_21 = arith.constant 1 : i32
    %48 = tpu.dynamic_rotate %47 by %c1_i32_21 dim 0 : vector<8x8xf32>, i32 -> vector<8x8xf32>
    %cst_22 = arith.constant 0.000000e+00 : f32
    %49 = vector.shape_cast %3 : vector<8x1xi1> to vector<8x1xi1>
    %50 = vector.broadcast %49 : vector<8x1xi1> to vector<8x8xi1>
    %51 = vector.broadcast %cst_22 : f32 to vector<8x8xf32>
    %52 = arith.select %50, %51, %48 : vector<8x8xi1>, vector<8x8xf32>
    %c7_i32_23 = arith.constant 7 : i32
    %53 = tpu.dynamic_rotate %47 by %c7_i32_23 dim 0 : vector<8x8xf32>, i32 -> vector<8x8xf32>
    %cst_24 = arith.constant 0.000000e+00 : f32
    %54 = vector.shape_cast %5 : vector<8x1xi1> to vector<8x1xi1>
    %55 = vector.broadcast %54 : vector<8x1xi1> to vector<8x8xi1>
    %56 = vector.broadcast %cst_24 : f32 to vector<8x8xf32>
    %57 = arith.select %55, %56, %53 : vector<8x8xi1>, vector<8x8xf32>
    %58 = tpu.concatenate %52, %47, %57 in 1 : vector<8x8xf32>, vector<8x8xf32>, vector<8x8xf32> -> vector<8x24xf32>
    %c0_25 = arith.constant 0 : index
    %c0_26 = arith.constant 0 : index
    %59 = vector.load %arg3[%c0_25, %c0_26] : memref<24x4xf32, #tpu.memory_space<vmem>>, vector<24x4xf32>
    %cst_27 = arith.constant dense<0.000000e+00> : vector<8x4xf32>
    %60 = tpu.matmul %58, %59, %cst_27 {dimension_numbers = #tpu.dot_dimension_numbers<[1], [0], [0], [1], [0, 0, 1, 1], [], []>} : vector<8x24xf32>, vector<24x4xf32>, vector<8x4xf32> -> vector<8x4xf32>
    %c0_28 = arith.constant 0 : index
    %c0_29 = arith.constant 0 : index
    %61 = vector.load %arg8[%c0_28, %c0_29] : memref<1x4xf32, #tpu.memory_space<vmem>>, vector<1x4xf32>
    %62 = vector.broadcast %61 : vector<1x4xf32> to vector<8x4xf32>
    %63 = arith.addf %60, %62 : vector<8x4xf32>
    %cst_30 = arith.constant 0.000000e+00 : f32
    %64 = vector.broadcast %cst_30 : f32 to vector<8x4xf32>
    %65 = arith.cmpf oge, %63, %64 : vector<8x4xf32>
    %cst_31 = arith.constant 2.000000e-02 : f32
    %66 = vector.broadcast %cst_31 : f32 to vector<8x4xf32>
    %67 = arith.mulf %66, %63 : vector<8x4xf32>
    %68 = arith.select %65, %63, %67 : vector<8x4xi1>, vector<8x4xf32>
    %c1_i32_32 = arith.constant 1 : i32
    %69 = tpu.dynamic_rotate %68 by %c1_i32_32 dim 0 : vector<8x4xf32>, i32 -> vector<8x4xf32>
    %cst_33 = arith.constant 0.000000e+00 : f32
    %70 = vector.shape_cast %3 : vector<8x1xi1> to vector<8x1xi1>
    %71 = vector.broadcast %70 : vector<8x1xi1> to vector<8x4xi1>
    %72 = vector.broadcast %cst_33 : f32 to vector<8x4xf32>
    %73 = arith.select %71, %72, %69 : vector<8x4xi1>, vector<8x4xf32>
    %c7_i32_34 = arith.constant 7 : i32
    %74 = tpu.dynamic_rotate %68 by %c7_i32_34 dim 0 : vector<8x4xf32>, i32 -> vector<8x4xf32>
    %cst_35 = arith.constant 0.000000e+00 : f32
    %75 = vector.shape_cast %5 : vector<8x1xi1> to vector<8x1xi1>
    %76 = vector.broadcast %75 : vector<8x1xi1> to vector<8x4xi1>
    %77 = vector.broadcast %cst_35 : f32 to vector<8x4xf32>
    %78 = arith.select %76, %77, %74 : vector<8x4xi1>, vector<8x4xf32>
    %79 = tpu.concatenate %73, %68, %78 in 1 : vector<8x4xf32>, vector<8x4xf32>, vector<8x4xf32> -> vector<8x12xf32>
    %c0_36 = arith.constant 0 : index
    %c0_37 = arith.constant 0 : index
    %80 = vector.load %arg4[%c0_36, %c0_37] : memref<12x2xf32, #tpu.memory_space<vmem>>, vector<12x2xf32>
    %cst_38 = arith.constant dense<0.000000e+00> : vector<8x2xf32>
    %81 = tpu.matmul %79, %80, %cst_38 {dimension_numbers = #tpu.dot_dimension_numbers<[1], [0], [0], [1], [0, 0, 1, 1], [], []>} : vector<8x12xf32>, vector<12x2xf32>, vector<8x2xf32> -> vector<8x2xf32>
    %c0_39 = arith.constant 0 : index
    %c0_40 = arith.constant 0 : index
    %82 = vector.load %arg9[%c0_39, %c0_40] : memref<1x2xf32, #tpu.memory_space<vmem>>, vector<1x2xf32>
    %83 = vector.broadcast %82 : vector<1x2xf32> to vector<8x2xf32>
    %84 = arith.addf %81, %83 : vector<8x2xf32>
    %cst_41 = arith.constant 0.000000e+00 : f32
    %85 = vector.broadcast %cst_41 : f32 to vector<8x2xf32>
    %86 = arith.cmpf oge, %84, %85 : vector<8x2xf32>
    %cst_42 = arith.constant 2.000000e-02 : f32
    %87 = vector.broadcast %cst_42 : f32 to vector<8x2xf32>
    %88 = arith.mulf %87, %84 : vector<8x2xf32>
    %89 = arith.select %86, %84, %88 : vector<8x2xi1>, vector<8x2xf32>
    %c1_i32_43 = arith.constant 1 : i32
    %90 = tpu.dynamic_rotate %89 by %c1_i32_43 dim 0 : vector<8x2xf32>, i32 -> vector<8x2xf32>
    %cst_44 = arith.constant 0.000000e+00 : f32
    %91 = vector.shape_cast %3 : vector<8x1xi1> to vector<8x1xi1>
    %92 = vector.broadcast %91 : vector<8x1xi1> to vector<8x2xi1>
    %93 = vector.broadcast %cst_44 : f32 to vector<8x2xf32>
    %94 = arith.select %92, %93, %90 : vector<8x2xi1>, vector<8x2xf32>
    %c7_i32_45 = arith.constant 7 : i32
    %95 = tpu.dynamic_rotate %89 by %c7_i32_45 dim 0 : vector<8x2xf32>, i32 -> vector<8x2xf32>
    %cst_46 = arith.constant 0.000000e+00 : f32
    %96 = vector.shape_cast %5 : vector<8x1xi1> to vector<8x1xi1>
    %97 = vector.broadcast %96 : vector<8x1xi1> to vector<8x2xi1>
    %98 = vector.broadcast %cst_46 : f32 to vector<8x2xf32>
    %99 = arith.select %97, %98, %95 : vector<8x2xi1>, vector<8x2xf32>
    %100 = tpu.concatenate %94, %89, %99 in 1 : vector<8x2xf32>, vector<8x2xf32>, vector<8x2xf32> -> vector<8x6xf32>
    %c0_47 = arith.constant 0 : index
    %c0_48 = arith.constant 0 : index
    %101 = vector.load %arg5[%c0_47, %c0_48] : memref<6x1xf32, #tpu.memory_space<vmem>>, vector<6x1xf32>
    %cst_49 = arith.constant dense<0.000000e+00> : vector<8x1xf32>
    %102 = tpu.matmul %100, %101, %cst_49 {dimension_numbers = #tpu.dot_dimension_numbers<[1], [0], [0], [1], [0, 0, 1, 1], [], []>} : vector<8x6xf32>, vector<6x1xf32>, vector<8x1xf32> -> vector<8x1xf32>
    %c0_50 = arith.constant 0 : index
    %c0_51 = arith.constant 0 : index
    %103 = vector.load %arg10[%c0_50, %c0_51] : memref<1x1xf32, #tpu.memory_space<vmem>>, vector<1x1xf32>
    %104 = vector.broadcast %103 : vector<1x1xf32> to vector<8x1xf32>
    %105 = arith.addf %102, %104 : vector<8x1xf32>
    %cst_52 = arith.constant 0.000000e+00 : f32
    %106 = vector.broadcast %cst_52 : f32 to vector<8x1xf32>
    %107 = arith.cmpf oge, %105, %106 : vector<8x1xf32>
    %cst_53 = arith.constant 2.000000e-02 : f32
    %108 = vector.broadcast %cst_53 : f32 to vector<8x1xf32>
    %109 = arith.mulf %108, %105 : vector<8x1xf32>
    %110 = arith.select %107, %105, %109 : vector<8x1xi1>, vector<8x1xf32>
    %c0_54 = arith.constant 0 : index
    %c0_55 = arith.constant 0 : index
    %111 = vector.load %arg11[%c0_54, %c0_55] : memref<8x8xf32, #tpu.memory_space<vmem>>, vector<8x8xf32>
    %cst_56 = arith.constant dense<0.000000e+00> : vector<8x1xf32>
    %112 = tpu.matmul %111, %110, %cst_56 {dimension_numbers = #tpu.dot_dimension_numbers<[1], [0], [0], [1], [0, 0, 1, 1], [], []>} : vector<8x8xf32>, vector<8x1xf32>, vector<8x1xf32> -> vector<8x1xf32>
    %c0_57 = arith.constant 0 : index
    %c0_58 = arith.constant 0 : index
    %113 = vector.load %arg12[%c0_57, %c0_58] : memref<8x1xf32, #tpu.memory_space<vmem>>, vector<8x1xf32>
    %114 = arith.addf %112, %113 : vector<8x1xf32>
    %cst_59 = arith.constant dense<0xFF800000> : vector<1xf32>
    %115 = vector.multi_reduction <maximumf>, %114, %cst_59 [0] : vector<8x1xf32> to vector<1xf32>
    %116 = vector.shape_cast %115 : vector<1xf32> to vector<1x1xf32>
    %117 = vector.broadcast %116 : vector<1x1xf32> to vector<8x1xf32>
    %118 = arith.subf %114, %117 : vector<8x1xf32>
    %119 = math.exp %118 : vector<8x1xf32>
    %cst_60 = arith.constant dense<0.000000e+00> : vector<1xf32>
    %120 = vector.multi_reduction <add>, %119, %cst_60 [0] : vector<8x1xf32> to vector<1xf32>
    %121 = vector.shape_cast %120 : vector<1xf32> to vector<1x1xf32>
    %122 = vector.broadcast %121 : vector<1x1xf32> to vector<8x1xf32>
    %123 = arith.divf %119, %122 : vector<8x1xf32>
    %124 = vector.broadcast %123 : vector<8x1xf32> to vector<8x64xf32>
    %125 = arith.mulf %124, %0 : vector<8x64xf32>
    %cst_61 = arith.constant dense<0.000000e+00> : vector<64xf32>
    %126 = vector.multi_reduction <add>, %125, %cst_61 [0] : vector<8x64xf32> to vector<64xf32>
    %127 = vector.shape_cast %126 : vector<64xf32> to vector<1x64xf32>
    %c0_62 = arith.constant 0 : index
    %c0_63 = arith.constant 0 : index
    %128 = vector.load %arg13[%c0_62, %c0_63] : memref<1x64xf32, #tpu.memory_space<vmem>>, vector<1x64xf32>
    tpu.vector_store %arg13[%c0_62, %c0_63], %127 {strides = array<i32>} : memref<1x64xf32, #tpu.memory_space<vmem>>, vector<1x64xf32>,
    return
  }
}

</mosaic_0001>

<llo_original>
// kernel: audio_att_net.1
$region0: #{audio_att_net.1}
  #allocation0 [shape = 'u32[]', space=smem, size = 0x4, offset = 0x4, fixed_abs, tag = 'smem constant byte address 0x4 - core index']
  #allocation1 [shape = 'u32[144,128]{1,0:T(1,128)}', space=vmem, size = 0x12000, scoped, tag = 'internal scratch']
  #allocation2 [shape = 'f32[1,1]{1,0:T(1,128)S(1)}', space=vmem, size = 0x200, scoped, tag = 'scoped memory for audio_att_net.1']
  %s0 = inlined_call_operand.vmem [shape: f32[8,64], index: 0, kind: input, shape index: {}]
  %s1 = inlined_call_operand.vmem [shape: f32[192,16], index: 1, kind: input, shape index: {}]
  %s2 = inlined_call_operand.vmem [shape: f32[48,8], index: 2, kind: input, shape index: {}]
  %s3 = inlined_call_operand.vmem [shape: f32[24,4], index: 3, kind: input, shape index: {}]
  %s4 = inlined_call_operand.vmem [shape: f32[12,2], index: 4, kind: input, shape index: {}]
  %s5 = inlined_call_operand.vmem [shape: f32[6,1], index: 5, kind: input, shape index: {}]
  %s6 = inlined_call_operand.vmem [shape: f32[1,16], index: 6, kind: input, shape index: {}]
  %s7 = inlined_call_operand.vmem [shape: f32[1,8], index: 7, kind: input, shape index: {}]
  %s8 = inlined_call_operand.vmem [shape: f32[1,4], index: 8, kind: input, shape index: {}]
  %s9 = inlined_call_operand.vmem [shape: f32[1,2], index: 9, kind: input, shape index: {}]
  %s10 = inlined_call_operand.<no memory space> [shape: f32[1,1], index: 10, kind: input, shape index: {}]
  %s11 = inlined_call_operand.vmem [shape: f32[8,8], index: 11, kind: input, shape index: {}]
  %s12 = inlined_call_operand.vmem [shape: f32[8,1], index: 12, kind: input, shape index: {}]
  %s13 = inlined_call_operand.hbm [shape: f32[1,64], index: 13, kind: output, shape index: {}]
  %s14 = sld [smem:[#allocation0]]
  $region62: #{audio_att_net.1} parent=0
    _
  %s16 = ssub.s32 1, %s14
  %s17 = scalar_select 0, %s16, %s14
  %v18 = vstv %s10
  %19 = vst [vmem:[#allocation2] sm:$0x1] %v18
  $region1: #{audio_att_net.1} parent=0
    #allocation3 [shape = 'u8[512]{0}', space=vmem, size = 0x400, scoped, tag = 'output window, operand 0, single buffered']
    #allocation4 [shape = 's32[1]{0}', space=sflag, size = 0x4, scoped, tag = 'scoped memory for audio_att_net.1']
    %20 = vsyncpa [#allocation4], 0
    // Predicated region
    $region2: #{audio_att_net.1} parent=1 // pred_check
      _
    $region3: #{audio_att_net.1} parent=1 // pred_check_branch
      %22 = sbr.rel (0) target = $region5
    $region4: #{audio_att_net.1} parent=1 // pred_region
      _
    $region5: #{audio_att_net.1} parent=1 // pred_fallthru
      _
    // Predicated region
    $region6: #{audio_att_net.1} parent=1 // pred_check
      _
    $region7: #{audio_att_net.1} parent=1 // pred_check_branch
      %24 = sbr.rel (0) target = $region9
    $region8: #{audio_att_net.1} parent=1 // pred_region
      _
    $region9: #{audio_att_net.1} parent=1 // pred_fallthru
      _
    // Predicated region
    $region10: #{audio_att_net.1} parent=1 // pred_check
      _
    $region11: #{audio_att_net.1} parent=1 // pred_check_branch
      %26 = sbr.rel (0) target = $region13
    $region12: #{audio_att_net.1} parent=1 // pred_region
      _
    $region13: #{audio_att_net.1} parent=1 // pred_fallthru
      _
    // Predicated region
    $region14: #{audio_att_net.1} parent=1 // pred_check
      _
    $region15: #{audio_att_net.1} parent=1 // pred_check_branch
      %28 = sbr.rel (0) target = $region17
    $region16: #{audio_att_net.1} parent=1 // pred_region
      _
    $region17: #{audio_att_net.1} parent=1 // pred_fallthru
      _
    // Predicated region
    $region18: #{audio_att_net.1} parent=1 // pred_check
      _
    $region19: #{audio_att_net.1} parent=1 // pred_check_branch
      %30 = sbr.rel (0) target = $region21
    $region20: #{audio_att_net.1} parent=1 // pred_region
      _
    $region21: #{audio_att_net.1} parent=1 // pred_fallthru
      _
    // Predicated region
    $region22: #{audio_att_net.1} parent=1 // pred_check
      _
    $region23: #{audio_att_net.1} parent=1 // pred_check_branch
      %32 = sbr.rel (0) target = $region25
    $region24: #{audio_att_net.1} parent=1 // pred_region
      _
    $region25: #{audio_att_net.1} parent=1 // pred_fallthru
      _
    // Predicated region
    $region26: #{audio_att_net.1} parent=1 // pred_check
      _
    $region27: #{audio_att_net.1} parent=1 // pred_check_branch
      %34 = sbr.rel (0) target = $region29
    $region28: #{audio_att_net.1} parent=1 // pred_region
      _
    $region29: #{audio_att_net.1} parent=1 // pred_fallthru
      _
    // Predicated region
    $region30: #{audio_att_net.1} parent=1 // pred_check
      _
    $region31: #{audio_att_net.1} parent=1 // pred_check_branch
      %36 = sbr.rel (0) target = $region33
    $region32: #{audio_att_net.1} parent=1 // pred_region
      _
    $region33: #{audio_att_net.1} parent=1 // pred_fallthru
      _
    // Predicated region
    $region34: #{audio_att_net.1} parent=1 // pred_check
      _
    $region35: #{audio_att_net.1} parent=1 // pred_check_branch
      %38 = sbr.rel (0) target = $region37
    $region36: #{audio_att_net.1} parent=1 // pred_region
      _
    $region37: #{audio_att_net.1} parent=1 // pred_fallthru
      _
    // Predicated region
    $region38: #{audio_att_net.1} parent=1 // pred_check
      _
    $region39: #{audio_att_net.1} parent=1 // pred_check_branch
      %40 = sbr.rel (0) target = $region41
    $region40: #{audio_att_net.1} parent=1 // pred_region
      _
    $region41: #{audio_att_net.1} parent=1 // pred_fallthru
      _
    // Predicated region
    $region42: #{audio_att_net.1} parent=1 // pred_check
      _
    $region43: #{audio_att_net.1} parent=1 // pred_check_branch
      %42 = sbr.rel (0) target = $region45
    $region44: #{audio_att_net.1} parent=1 // pred_region
      _
    $region45: #{audio_att_net.1} parent=1 // pred_fallthru
      _
    // Predicated region
    $region46: #{audio_att_net.1} parent=1 // pred_check
      _
    $region47: #{audio_att_net.1} parent=1 // pred_check_branch
      %44 = sbr.rel (0) target = $region49
    $region48: #{audio_att_net.1} parent=1 // pred_region
      _
    $region49: #{audio_att_net.1} parent=1 // pred_fallthru
      _
    // Predicated region
    $region50: #{audio_att_net.1} parent=1 // pred_check
      _
    $region51: #{audio_att_net.1} parent=1 // pred_check_branch
      %46 = sbr.rel (0) target = $region53
    $region52: #{audio_att_net.1} parent=1 // pred_region
      _
    $region53: #{audio_att_net.1} parent=1 // pred_fallthru
      _
    %v47 = vld [vmem:[%s0] sm:$0xff]
    %v48 = vlaneseq
    %v49 = vshrl.u32 %v48, 7
    %vm50 = vcmp.eq.s32.totalorder %v49, 0
    %vm51 = vcmp.eq.s32.totalorder %v49, 7
    %v52 = vrot.slane %v47, 7
    %v53 = vsel %vm50, 1, 0
    %vm54 = vcmp.eq.s32.totalorder %v53, 1
    %v55 = vsel %vm54, 0.0, %v52
    %v56 = vrot.slane %v47, 1
    %v57 = vsel %vm51, 1, 0
    %vm58 = vcmp.eq.s32.totalorder %v57, 1
    %v59 = vsel %vm58, 0.0, %v56
    %61 = vrot.lane.b32.xlu0 %v47, 64
    %v62 = vpop.permute.xlu0 %61
    %vm64 = vcmask 523264
    %v65 = vsel %vm64, %v55, %v62
    %v66 = vld [vmem:[%s1] sm:$0xff]
    %v67 = vld [vmem:[%s1 + $0x8] sm:$0xff]
    %v68 = vld [vmem:[%s1 + $0x10] sm:$0xff]
    %v69 = vld [vmem:[%s1 + $0x18] sm:$0xff]
    %v70 = vld [vmem:[%s1 + $0x20] sm:$0xff]
    %v71 = vld [vmem:[%s1 + $0x28] sm:$0xff]
    %v72 = vld [vmem:[%s1 + $0x30] sm:$0xff]
    %v73 = vld [vmem:[%s1 + $0x38] sm:$0xff]
    %v74 = vld [vmem:[%s1 + $0x40] sm:$0xff]
    %v75 = vld [vmem:[%s1 + $0x48] sm:$0xff]
    %v76 = vld [vmem:[%s1 + $0x50] sm:$0xff]
    %v77 = vld [vmem:[%s1 + $0x58] sm:$0xff]
    %v78 = vld [vmem:[%s1 + $0x60] sm:$0xff]
    %v79 = vld [vmem:[%s1 + $0x68] sm:$0xff]
    %v80 = vld [vmem:[%s1 + $0x70] sm:$0xff]
    %v81 = vld [vmem:[%s1 + $0x78] sm:$0xff]
    %v82 = vld [vmem:[%s1 + $0x80] sm:$0xff]
    %v83 = vld [vmem:[%s1 + $0x88] sm:$0xff]
    %v84 = vld [vmem:[%s1 + $0x90] sm:$0xff]
    %v85 = vld [vmem:[%s1 + $0x98] sm:$0xff]
    %v86 = vld [vmem:[%s1 + $0xa0] sm:$0xff]
    %v87 = vld [vmem:[%s1 + $0xa8] sm:$0xff]
    %v88 = vld [vmem:[%s1 + $0xb0] sm:$0xff]
    %v89 = vld [vmem:[%s1 + $0xb8] sm:$0xff]
    %v90 = vld [vmem:[%s6] sm:$0x1]
    %v92 = vlaneseq
    %v93 = vshrl.u32 %v92, 7
    %v94 = vsub.s32 0, %v93
    %v95 = vrot.slane %v90, %v94
    %v98 = vsel %vm64, %v59, 0
    %100 = vmatprep.subr.mxu0 0.0
    %101 = vmatpush1.msra.mxu0 %v81
    %102 = vmatprep.subr.mxu0 0.0
    %103 = vmatpush1.msra.mxu0 %v80
    %104 = vmatprep.subr.mxu0 0.0
    %105 = vmatpush1.msra.mxu0 %v79
    %106 = vmatprep.subr.mxu0 0.0
    %107 = vmatpush1.msra.mxu0 %v78
    %108 = vmatprep.subr.mxu0 0.0
    %109 = vmatpush1.msra.mxu0 %v77
    %110 = vmatprep.subr.mxu0 0.0
    %111 = vmatpush1.msra.mxu0 %v76
    %112 = vmatprep.subr.mxu0 0.0
    %113 = vmatpush1.msra.mxu0 %v75
    %114 = vmatprep.subr.mxu0 0.0
    %115 = vmatpush1.msra.mxu0 %v74
    %116 = vmatprep.subr.mxu0 0.0
    %117 = vmatpush1.msra.mxu0 %v73
    %118 = vmatprep.subr.mxu0 0.0
    %119 = vmatpush1.msra.mxu0 %v72
    %120 = vmatprep.subr.mxu0 0.0
    %121 = vmatpush1.msra.mxu0 %v71
    %122 = vmatprep.subr.mxu0 0.0
    %123 = vmatpush1.msra.mxu0 %v70
    %124 = vmatprep.subr.mxu0 0.0
    %125 = vmatpush1.msra.mxu0 %v69
    %126 = vmatprep.subr.mxu0 0.0
    %127 = vmatpush1.msra.mxu0 %v68
    %128 = vmatprep.subr.mxu0 0.0
    %129 = vmatpush1.msra.mxu0 %v67
    %130 = vmatprep.subr.mxu0 0.0
    %131 = vmatpush1.msra.mxu0 %v66
    %132 = vmatprep.subr.mxu0 0.0
    %133 = vmatpush2.msra.mxu0 0.0
    %134 = vmatprep.subr.mxu0 0.0
    %135 = vmatpush2.msra.mxu0 0.0
    %136 = vmatprep.subr.mxu0 0.0
    %137 = vmatpush2.msra.mxu0 0.0
    %138 = vmatprep.subr.mxu0 0.0
    %139 = vmatpush2.msra.mxu0 0.0
    %140 = vmatprep.subr.mxu0 0.0
    %141 = vmatpush2.msra.mxu0 0.0
    %142 = vmatprep.subr.mxu0 0.0
    %143 = vmatpush2.msra.mxu0 0.0
    %144 = vmatprep.subr.mxu0 0.0
    %145 = vmatpush2.msra.mxu0 0.0
    %146 = vmatprep.subr.mxu0 0.0
    %147 = vmatpush2.msra.mxu0 0.0
    %148 = vmatprep.subr.mxu0 0.0
    %149 = vmatpush2.msra.mxu0 %v89
    %150 = vmatprep.subr.mxu0 0.0
    %151 = vmatpush2.msra.mxu0 %v88
    %152 = vmatprep.subr.mxu0 0.0
    %153 = vmatpush2.msra.mxu0 %v87
    %154 = vmatprep.subr.mxu0 0.0
    %155 = vmatpush2.msra.mxu0 %v86
    %156 = vmatprep.subr.mxu0 0.0
    %157 = vmatpush2.msra.mxu0 %v85
    %158 = vmatprep.subr.mxu0 0.0
    %159 = vmatpush2.msra.mxu0 %v84
    %160 = vmatprep.subr.mxu0 0.0
    %161 = vmatpush2.msra.mxu0 %v83
    %162 = vmatprep.subr.mxu0 0.0
    %163 = vmatpush2.msra.mxu0 %v82
    %164 = vmatprep.mubr.f32.mxu0 %v98
    %165 = vmatmul.mubr.f32.gmra.mxu0 %v65
    %v166 = vpop.f32.mrf.mxu0
    %v167 = vadd.f32 %v95, %v166
    %v168 = vpop.f32.mrf.mxu0
    %169 = vdwg.mxu0
    %vm170 = vcmp.ge.f32.partialorder %v167, 0.0
    %v171 = vmul.f32 %v167, 0.02
    %v172 = vsel %vm170, %v167, %v171
    %v173 = vrot.slane %v172, 7
    %v174 = vsel %vm54, 0.0, %v173
    %v175 = vrot.slane %v172, 1
    %v176 = vsel %vm58, 0.0, %v175
    %178 = vrot.lane.b32.xlu0 %v172, 16
    %v179 = vpop.permute.xlu0 %178
    %182 = vrot.lane.b32.xlu0 %v176, 32
    %v183 = vpop.permute.xlu0 %182
    %vm185 = vcmask 130048
    %v186 = vsel %vm185, %v174, %v179
    %vm187 = vcmask 261120
    %v188 = vsel %vm187, %v186, %v183
    %v189 = vld [vmem:[%s2] sm:$0xff]
    %v190 = vld [vmem:[%s2 + $0x8] sm:$0xff]
    %v191 = vld [vmem:[%s2 + $0x10] sm:$0xff]
    %v192 = vld [vmem:[%s2 + $0x18] sm:$0xff]
    %v193 = vld [vmem:[%s2 + $0x20] sm:$0xff]
    %v194 = vld [vmem:[%s2 + $0x28] sm:$0xff]
    %v195 = vld [vmem:[%s7] sm:$0x1]
    %v197 = vlaneseq
    %v198 = vshrl.u32 %v197, 7
    %v199 = vsub.s32 0, %v198
    %v200 = vrot.slane %v195, %v199
    %vm202 = vcmask 392192
    %v204 = vsel %vm202, %v188, 0
    %206 = vmatprep.subr.mxu0 0.0
    %207 = vmatpush1.msra.mxu0 0.0
    %208 = vmatprep.subr.mxu0 0.0
    %209 = vmatpush1.msra.mxu0 0.0
    %210 = vmatprep.subr.mxu0 0.0
    %211 = vmatpush1.msra.mxu0 0.0
    %212 = vmatprep.subr.mxu0 0.0
    %213 = vmatpush1.msra.mxu0 0.0
    %214 = vmatprep.subr.mxu0 0.0
    %215 = vmatpush1.msra.mxu0 0.0
    %216 = vmatprep.subr.mxu0 0.0
    %217 = vmatpush1.msra.mxu0 0.0
    %218 = vmatprep.subr.mxu0 0.0
    %219 = vmatpush1.msra.mxu0 0.0
    %220 = vmatprep.subr.mxu0 0.0
    %221 = vmatpush1.msra.mxu0 0.0
    %222 = vmatprep.subr.mxu0 0.0
    %223 = vmatpush1.msra.mxu0 0.0
    %224 = vmatprep.subr.mxu0 0.0
    %225 = vmatpush1.msra.mxu0 0.0
    %226 = vmatprep.subr.mxu0 0.0
    %227 = vmatpush1.msra.mxu0 %v194
    %228 = vmatprep.subr.mxu0 0.0
    %229 = vmatpush1.msra.mxu0 %v193
    %230 = vmatprep.subr.mxu0 0.0
    %231 = vmatpush1.msra.mxu0 %v192
    %232 = vmatprep.subr.mxu0 0.0
    %233 = vmatpush1.msra.mxu0 %v191
    %234 = vmatprep.subr.mxu0 0.0
    %235 = vmatpush1.msra.mxu0 %v190
    %236 = vmatprep.subr.mxu0 0.0
    %237 = vmatpush1.msra.mxu0 %v189
    %238 = vmatprep.subr.mxu0 0.0
    %239 = vmatpush2.msra.mxu0 0.0
    %240 = vmatprep.subr.mxu0 0.0
    %241 = vmatpush2.msra.mxu0 0.0
    %242 = vmatprep.subr.mxu0 0.0
    %243 = vmatpush2.msra.mxu0 0.0
    %244 = vmatprep.subr.mxu0 0.0
    %245 = vmatpush2.msra.mxu0 0.0
    %246 = vmatprep.subr.mxu0 0.0
    %247 = vmatpush2.msra.mxu0 0.0
    %248 = vmatprep.subr.mxu0 0.0
    %249 = vmatpush2.msra.mxu0 0.0
    %250 = vmatprep.subr.mxu0 0.0
    %251 = vmatpush2.msra.mxu0 0.0
    %252 = vmatprep.subr.mxu0 0.0
    %253 = vmatpush2.msra.mxu0 0.0
    %254 = vmatprep.subr.mxu0 0.0
    %255 = vmatpush2.msra.mxu0 0.0
    %256 = vmatprep.subr.mxu0 0.0
    %257 = vmatpush2.msra.mxu0 0.0
    %258 = vmatprep.subr.mxu0 0.0
    %259 = vmatpush2.msra.mxu0 0.0
    %260 = vmatprep.subr.mxu0 0.0
    %261 = vmatpush2.msra.mxu0 0.0
    %262 = vmatprep.subr.mxu0 0.0
    %263 = vmatpush2.msra.mxu0 0.0
    %264 = vmatprep.subr.mxu0 0.0
    %265 = vmatpush2.msra.mxu0 0.0
    %266 = vmatprep.subr.mxu0 0.0
    %267 = vmatpush2.msra.mxu0 0.0
    %268 = vmatprep.subr.mxu0 0.0
    %269 = vmatpush2.msra.mxu0 0.0
    %270 = vmatprep.mubr.f32.mxu0 0.0
    %271 = vmatmul.mubr.f32.gmra.mxu0 %v204
    %v272 = vpop.f32.mrf.mxu0
    %v273 = vadd.f32 %v200, %v272
    %v274 = vpop.f32.mrf.mxu0
    %275 = vdwg.mxu0
    %vm276 = vcmp.ge.f32.partialorder %v273, 0.0
    %v277 = vmul.f32 %v273, 0.02
    %v278 = vsel %vm276, %v273, %v277
    %v279 = vrot.slane %v278, 7
    %v280 = vsel %vm54, 0.0, %v279
    %v281 = vrot.slane %v278, 1
    %v282 = vsel %vm58, 0.0, %v281
    %284 = vrot.lane.b32.xlu0 %v278, 8
    %v285 = vpop.permute.xlu0 %284
    %288 = vrot.lane.b32.xlu0 %v282, 16
    %v289 = vpop.permute.xlu0 %288
    %vm291 = vcmask 64512
    %v292 = vsel %vm291, %v280, %v285
    %v293 = vsel %vm185, %v292, %v289
    %v294 = vld [vmem:[%s3] sm:$0xff]
    %v295 = vld [vmem:[%s3 + $0x8] sm:$0xff]
    %v296 = vld [vmem:[%s3 + $0x10] sm:$0xff]
    %v297 = vld [vmem:[%s8] sm:$0x1]
    %v299 = vlaneseq
    %v300 = vshrl.u32 %v299, 7
    %v301 = vsub.s32 0, %v300
    %v302 = vrot.slane %v297, %v301
    %vm304 = vcmask 195584
    %v306 = vsel %vm304, %v293, 0
    %308 = vmatprep.subr.mxu0 0.0
    %309 = vmatpush1.msra.mxu0 0.0
    %310 = vmatprep.subr.mxu0 0.0
    %311 = vmatpush1.msra.mxu0 0.0
    %312 = vmatprep.subr.mxu0 0.0
    %313 = vmatpush1.msra.mxu0 0.0
    %314 = vmatprep.subr.mxu0 0.0
    %315 = vmatpush1.msra.mxu0 0.0
    %316 = vmatprep.subr.mxu0 0.0
    %317 = vmatpush1.msra.mxu0 0.0
    %318 = vmatprep.subr.mxu0 0.0
    %319 = vmatpush1.msra.mxu0 0.0
    %320 = vmatprep.subr.mxu0 0.0
    %321 = vmatpush1.msra.mxu0 0.0
    %322 = vmatprep.subr.mxu0 0.0
    %323 = vmatpush1.msra.mxu0 0.0
    %324 = vmatprep.subr.mxu0 0.0
    %325 = vmatpush1.msra.mxu0 0.0
    %326 = vmatprep.subr.mxu0 0.0
    %327 = vmatpush1.msra.mxu0 0.0
    %328 = vmatprep.subr.mxu0 0.0
    %329 = vmatpush1.msra.mxu0 0.0
    %330 = vmatprep.subr.mxu0 0.0
    %331 = vmatpush1.msra.mxu0 0.0
    %332 = vmatprep.subr.mxu0 0.0
    %333 = vmatpush1.msra.mxu0 0.0
    %334 = vmatprep.subr.mxu0 0.0
    %335 = vmatpush1.msra.mxu0 %v296
    %336 = vmatprep.subr.mxu0 0.0
    %337 = vmatpush1.msra.mxu0 %v295
    %338 = vmatprep.subr.mxu0 0.0
    %339 = vmatpush1.msra.mxu0 %v294
    %340 = vmatprep.subr.mxu0 0.0
    %341 = vmatpush2.msra.mxu0 0.0
    %342 = vmatprep.subr.mxu0 0.0
    %343 = vmatpush2.msra.mxu0 0.0
    %344 = vmatprep.subr.mxu0 0.0
    %345 = vmatpush2.msra.mxu0 0.0
    %346 = vmatprep.subr.mxu0 0.0
    %347 = vmatpush2.msra.mxu0 0.0
    %348 = vmatprep.subr.mxu0 0.0
    %349 = vmatpush2.msra.mxu0 0.0
    %350 = vmatprep.subr.mxu0 0.0
    %351 = vmatpush2.msra.mxu0 0.0
    %352 = vmatprep.subr.mxu0 0.0
    %353 = vmatpush2.msra.mxu0 0.0
    %354 = vmatprep.subr.mxu0 0.0
    %355 = vmatpush2.msra.mxu0 0.0
    %356 = vmatprep.subr.mxu0 0.0
    %357 = vmatpush2.msra.mxu0 0.0
    %358 = vmatprep.subr.mxu0 0.0
    %359 = vmatpush2.msra.mxu0 0.0
    %360 = vmatprep.subr.mxu0 0.0
    %361 = vmatpush2.msra.mxu0 0.0
    %362 = vmatprep.subr.mxu0 0.0
    %363 = vmatpush2.msra.mxu0 0.0
    %364 = vmatprep.subr.mxu0 0.0
    %365 = vmatpush2.msra.mxu0 0.0
    %366 = vmatprep.subr.mxu0 0.0
    %367 = vmatpush2.msra.mxu0 0.0
    %368 = vmatprep.subr.mxu0 0.0
    %369 = vmatpush2.msra.mxu0 0.0
    %370 = vmatprep.subr.mxu0 0.0
    %371 = vmatpush2.msra.mxu0 0.0
    %372 = vmatprep.mubr.f32.mxu0 0.0
    %373 = vmatmul.mubr.f32.gmra.mxu0 %v306
    %v374 = vpop.f32.mrf.mxu0
    %v375 = vadd.f32 %v302, %v374
    %v376 = vpop.f32.mrf.mxu0
    %377 = vdwg.mxu0
    %vm378 = vcmp.ge.f32.partialorder %v375, 0.0
    %v379 = vmul.f32 %v375, 0.02
    %v380 = vsel %vm378, %v375, %v379
    %v381 = vrot.slane %v380, 7
    %v382 = vsel %vm54, 0.0, %v381
    %v383 = vrot.slane %v380, 1
    %v384 = vsel %vm58, 0.0, %v383
    %386 = vrot.lane.b32.xlu0 %v380, 4
    %v387 = vpop.permute.xlu0 %386
    %390 = vrot.lane.b32.xlu0 %v384, 8
    %v391 = vpop.permute.xlu0 %390
    %vm393 = vcmask 31744
    %v394 = vsel %vm393, %v382, %v387
    %v395 = vsel %vm291, %v394, %v391
    %v396 = vld [vmem:[%s4] sm:$0xff]
    %v397 = vld [vmem:[%s4 + $0x8] sm:$0xf]
    %v398 = vld [vmem:[%s9] sm:$0x1]
    %v400 = vlaneseq
    %v401 = vshrl.u32 %v400, 7
    %v402 = vsub.s32 0, %v401
    %v403 = vrot.slane %v398, %v402
    %vm405 = vcmask 97280
    %v407 = vsel %vm405, %v395, 0
    %vm409 = vcmask 1043456
    %v411 = vsel %vm409, %v397, 0
    %413 = vmatprep.subr.mxu0 0.0
    %414 = vmatpush1.msra.mxu0 0.0
    %415 = vmatprep.subr.mxu0 0.0
    %416 = vmatpush1.msra.mxu0 0.0
    %417 = vmatprep.subr.mxu0 0.0
    %418 = vmatpush1.msra.mxu0 0.0
    %419 = vmatprep.subr.mxu0 0.0
    %420 = vmatpush1.msra.mxu0 0.0
    %421 = vmatprep.subr.mxu0 0.0
    %422 = vmatpush1.msra.mxu0 0.0
    %423 = vmatprep.subr.mxu0 0.0
    %424 = vmatpush1.msra.mxu0 0.0
    %425 = vmatprep.subr.mxu0 0.0
    %426 = vmatpush1.msra.mxu0 0.0
    %427 = vmatprep.subr.mxu0 0.0
    %428 = vmatpush1.msra.mxu0 0.0
    %429 = vmatprep.subr.mxu0 0.0
    %430 = vmatpush1.msra.mxu0 0.0
    %431 = vmatprep.subr.mxu0 0.0
    %432 = vmatpush1.msra.mxu0 0.0
    %433 = vmatprep.subr.mxu0 0.0
    %434 = vmatpush1.msra.mxu0 0.0
    %435 = vmatprep.subr.mxu0 0.0
    %436 = vmatpush1.msra.mxu0 0.0
    %437 = vmatprep.subr.mxu0 0.0
    %438 = vmatpush1.msra.mxu0 0.0
    %439 = vmatprep.subr.mxu0 0.0
    %440 = vmatpush1.msra.mxu0 0.0
    %441 = vmatprep.subr.mxu0 0.0
    %442 = vmatpush1.msra.mxu0 %v411
    %443 = vmatprep.subr.mxu0 0.0
    %444 = vmatpush1.msra.mxu0 %v396
    %445 = vmatprep.subr.mxu0 0.0
    %446 = vmatpush2.msra.mxu0 0.0
    %447 = vmatprep.subr.mxu0 0.0
    %448 = vmatpush2.msra.mxu0 0.0
    %449 = vmatprep.subr.mxu0 0.0
    %450 = vmatpush2.msra.mxu0 0.0
    %451 = vmatprep.subr.mxu0 0.0
    %452 = vmatpush2.msra.mxu0 0.0
    %453 = vmatprep.subr.mxu0 0.0
    %454 = vmatpush2.msra.mxu0 0.0
    %455 = vmatprep.subr.mxu0 0.0
    %456 = vmatpush2.msra.mxu0 0.0
    %457 = vmatprep.subr.mxu0 0.0
    %458 = vmatpush2.msra.mxu0 0.0
    %459 = vmatprep.subr.mxu0 0.0
    %460 = vmatpush2.msra.mxu0 0.0
    %461 = vmatprep.subr.mxu0 0.0
    %462 = vmatpush2.msra.mxu0 0.0
    %463 = vmatprep.subr.mxu0 0.0
    %464 = vmatpush2.msra.mxu0 0.0
    %465 = vmatprep.subr.mxu0 0.0
    %466 = vmatpush2.msra.mxu0 0.0
    %467 = vmatprep.subr.mxu0 0.0
    %468 = vmatpush2.msra.mxu0 0.0
    %469 = vmatprep.subr.mxu0 0.0
    %470 = vmatpush2.msra.mxu0 0.0
    %471 = vmatprep.subr.mxu0 0.0
    %472 = vmatpush2.msra.mxu0 0.0
    %473 = vmatprep.subr.mxu0 0.0
    %474 = vmatpush2.msra.mxu0 0.0
    %475 = vmatprep.subr.mxu0 0.0
    %476 = vmatpush2.msra.mxu0 0.0
    %477 = vmatprep.mubr.f32.mxu0 0.0
    %478 = vmatmul.mubr.f32.gmra.mxu0 %v407
    %v479 = vpop.f32.mrf.mxu0
    %v480 = vadd.f32 %v403, %v479
    %v481 = vpop.f32.mrf.mxu0
    %482 = vdwg.mxu0
    %vm483 = vcmp.ge.f32.partialorder %v480, 0.0
    %v484 = vmul.f32 %v480, 0.02
    %v485 = vsel %vm483, %v480, %v484
    %v486 = vrot.slane %v485, 7
    %v487 = vsel %vm54, 0.0, %v486
    %v488 = vrot.slane %v485, 1
    %v489 = vsel %vm58, 0.0, %v488
    %491 = vrot.lane.b32.xlu0 %v485, 2
    %v492 = vpop.permute.xlu0 %491
    %495 = vrot.lane.b32.xlu0 %v489, 4
    %v496 = vpop.permute.xlu0 %495
    %vm498 = vcmask 15360
    %v499 = vsel %vm498, %v487, %v492
    %v500 = vsel %vm393, %v499, %v496
    %v501 = vld [vmem:[%s5] sm:$0x3f]
    %v502 = vld [vmem:[#allocation2] sm:$0x1]
    %v504 = vlaneseq
    %v505 = vshrl.u32 %v504, 7
    %v506 = vsub.s32 0, %v505
    %v507 = vrot.slane %v502, %v506
    %vm509 = vcmask 48128
    %v511 = vsel %vm509, %v500, 0
    %vm513 = vcmask 1045504
    %v515 = vsel %vm513, %v501, 0
    %517 = vmatprep.subr.mxu0 0.0
    %518 = vmatpush1.msra.mxu0 0.0
    %519 = vmatprep.subr.mxu0 0.0
    %520 = vmatpush1.msra.mxu0 0.0
    %521 = vmatprep.subr.mxu0 0.0
    %522 = vmatpush1.msra.mxu0 0.0
    %523 = vmatprep.subr.mxu0 0.0
    %524 = vmatpush1.msra.mxu0 0.0
    %525 = vmatprep.subr.mxu0 0.0
    %526 = vmatpush1.msra.mxu0 0.0
    %527 = vmatprep.subr.mxu0 0.0
    %528 = vmatpush1.msra.mxu0 0.0
    %529 = vmatprep.subr.mxu0 0.0
    %530 = vmatpush1.msra.mxu0 0.0
    %531 = vmatprep.subr.mxu0 0.0
    %532 = vmatpush1.msra.mxu0 0.0
    %533 = vmatprep.subr.mxu0 0.0
    %534 = vmatpush1.msra.mxu0 0.0
    %535 = vmatprep.subr.mxu0 0.0
    %536 = vmatpush1.msra.mxu0 0.0
    %537 = vmatprep.subr.mxu0 0.0
    %538 = vmatpush1.msra.mxu0 0.0
    %539 = vmatprep.subr.mxu0 0.0
    %540 = vmatpush1.msra.mxu0 0.0
    %541 = vmatprep.subr.mxu0 0.0
    %542 = vmatpush1.msra.mxu0 0.0
    %543 = vmatprep.subr.mxu0 0.0
    %544 = vmatpush1.msra.mxu0 0.0
    %545 = vmatprep.subr.mxu0 0.0
    %546 = vmatpush1.msra.mxu0 0.0
    %547 = vmatprep.subr.mxu0 0.0
    %548 = vmatpush1.msra.mxu0 %v515
    %549 = vmatprep.subr.mxu0 0.0
    %550 = vmatpush2.msra.mxu0 0.0
    %551 = vmatprep.subr.mxu0 0.0
    %552 = vmatpush2.msra.mxu0 0.0
    %553 = vmatprep.subr.mxu0 0.0
    %554 = vmatpush2.msra.mxu0 0.0
    %555 = vmatprep.subr.mxu0 0.0
    %556 = vmatpush2.msra.mxu0 0.0
    %557 = vmatprep.subr.mxu0 0.0
    %558 = vmatpush2.msra.mxu0 0.0
    %559 = vmatprep.subr.mxu0 0.0
    %560 = vmatpush2.msra.mxu0 0.0
    %561 = vmatprep.subr.mxu0 0.0
    %562 = vmatpush2.msra.mxu0 0.0
    %563 = vmatprep.subr.mxu0 0.0
    %564 = vmatpush2.msra.mxu0 0.0
    %565 = vmatprep.subr.mxu0 0.0
    %566 = vmatpush2.msra.mxu0 0.0
    %567 = vmatprep.subr.mxu0 0.0
    %568 = vmatpush2.msra.mxu0 0.0
    %569 = vmatprep.subr.mxu0 0.0
    %570 = vmatpush2.msra.mxu0 0.0
    %571 = vmatprep.subr.mxu0 0.0
    %572 = vmatpush2.msra.mxu0 0.0
    %573 = vmatprep.subr.mxu0 0.0
    %574 = vmatpush2.msra.mxu0 0.0
    %575 = vmatprep.subr.mxu0 0.0
    %576 = vmatpush2.msra.mxu0 0.0
    %577 = vmatprep.subr.mxu0 0.0
    %578 = vmatpush2.msra.mxu0 0.0
    %579 = vmatprep.subr.mxu0 0.0
    %580 = vmatpush2.msra.mxu0 0.0
    %581 = vmatprep.mubr.f32.mxu0 0.0
    %582 = vmatmul.mubr.f32.gmra.mxu0 %v511
    %v583 = vpop.f32.mrf.mxu0
    %v584 = vadd.f32 %v507, %v583
    %v585 = vpop.f32.mrf.mxu0
    %586 = vdwg.mxu0
    %vm587 = vcmp.ge.f32.partialorder %v584, 0.0
    %v588 = vmul.f32 %v584, 0.02
    %v589 = vsel %vm587, %v584, %v588
    %v590 = vld [vmem:[%s11] sm:$0xff]
    %v591 = vld [vmem:[%s12] sm:$0xff]
    %v593 = vsel %vm291, %v590, 0
    %595 = vmatprep.subr.mxu0 0.0
    %596 = vmatpush1.msra.mxu0 0.0
    %597 = vmatprep.subr.mxu0 0.0
    %598 = vmatpush1.msra.mxu0 0.0
    %599 = vmatprep.subr.mxu0 0.0
    %600 = vmatpush1.msra.mxu0 0.0
    %601 = vmatprep.subr.mxu0 0.0
    %602 = vmatpush1.msra.mxu0 0.0
    %603 = vmatprep.subr.mxu0 0.0
    %604 = vmatpush1.msra.mxu0 0.0
    %605 = vmatprep.subr.mxu0 0.0
    %606 = vmatpush1.msra.mxu0 0.0
    %607 = vmatprep.subr.mxu0 0.0
    %608 = vmatpush1.msra.mxu0 0.0
    %609 = vmatprep.subr.mxu0 0.0
    %610 = vmatpush1.msra.mxu0 0.0
    %611 = vmatprep.subr.mxu0 0.0
    %612 = vmatpush1.msra.mxu0 0.0
    %613 = vmatprep.subr.mxu0 0.0
    %614 = vmatpush1.msra.mxu0 0.0
    %615 = vmatprep.subr.mxu0 0.0
    %616 = vmatpush1.msra.mxu0 0.0
    %617 = vmatprep.subr.mxu0 0.0
    %618 = vmatpush1.msra.mxu0 0.0
    %619 = vmatprep.subr.mxu0 0.0
    %620 = vmatpush1.msra.mxu0 0.0
    %621 = vmatprep.subr.mxu0 0.0
    %622 = vmatpush1.msra.mxu0 0.0
    %623 = vmatprep.subr.mxu0 0.0
    %624 = vmatpush1.msra.mxu0 0.0
    %625 = vmatprep.subr.mxu0 0.0
    %626 = vmatpush1.msra.mxu0 %v589
    %627 = vmatprep.subr.mxu0 0.0
    %628 = vmatpush2.msra.mxu0 0.0
    %629 = vmatprep.subr.mxu0 0.0
    %630 = vmatpush2.msra.mxu0 0.0
    %631 = vmatprep.subr.mxu0 0.0
    %632 = vmatpush2.msra.mxu0 0.0
    %633 = vmatprep.subr.mxu0 0.0
    %634 = vmatpush2.msra.mxu0 0.0
    %635 = vmatprep.subr.mxu0 0.0
    %636 = vmatpush2.msra.mxu0 0.0
    %637 = vmatprep.subr.mxu0 0.0
    %638 = vmatpush2.msra.mxu0 0.0
    %639 = vmatprep.subr.mxu0 0.0
    %640 = vmatpush2.msra.mxu0 0.0
    %641 = vmatprep.subr.mxu0 0.0
    %642 = vmatpush2.msra.mxu0 0.0
    %643 = vmatprep.subr.mxu0 0.0
    %644 = vmatpush2.msra.mxu0 0.0
    %645 = vmatprep.subr.mxu0 0.0
    %646 = vmatpush2.msra.mxu0 0.0
    %647 = vmatprep.subr.mxu0 0.0
    %648 = vmatpush2.msra.mxu0 0.0
    %649 = vmatprep.subr.mxu0 0.0
    %650 = vmatpush2.msra.mxu0 0.0
    %651 = vmatprep.subr.mxu0 0.0
    %652 = vmatpush2.msra.mxu0 0.0
    %653 = vmatprep.subr.mxu0 0.0
    %654 = vmatpush2.msra.mxu0 0.0
    %655 = vmatprep.subr.mxu0 0.0
    %656 = vmatpush2.msra.mxu0 0.0
    %657 = vmatprep.subr.mxu0 0.0
    %658 = vmatpush2.msra.mxu0 0.0
    %659 = vmatprep.mubr.f32.mxu0 0.0
    %660 = vmatmul.mubr.f32.gmra.mxu0 %v593
    %v661 = vpop.f32.mrf.mxu0
    %v662 = vadd.f32 %v591, %v661
    %v663 = vpop.f32.mrf.mxu0
    %664 = vdwg.mxu0
    %vm665 = vcmask 7168
    %v666 = vsel %vm665, %v662, -inf
    %v667 = vrot.slane %v666, 4
    %v668 = vmax.f32 %v666, %v667
    %v669 = vrot.slane %v668, 2
    %v670 = vmax.f32 %v668, %v669
    %v671 = vrot.slane %v670, 1
    %v672 = vmax.f32 %v670, %v671
    %v673 = vsub.f32 %v662, %v672
    %v674 = vmul.f32 %v673, 1.442695
    %v675 = vpow.pop %v674
    %v676 = vsel %vm665, %v675, 0.0
    %v677 = vrot.slane %v676, 4
    %v678 = vadd.f32 %v676, %v677
    %v679 = vrot.slane %v678, 2
    %v680 = vadd.f32 %v678, %v679
    %v681 = vrot.slane %v680, 1
    %v682 = vadd.f32 %v680, %v681
    %v683 = vrcp.pop %v682
    %v684 = vmul.f32 %v675, %v683
    %686 = vset.pattern.permute.xlu0 0
    %687 = vperm.xlu0 %686, %v684
    %v688 = vpop.permute.xlu0 %687
    %v690 = vmul.f32 %v688, %v47
    %v691 = vsel %vm64, %v690, 0.0
    %v692 = vrot.slane %v691, 4
    %v693 = vadd.f32 %v691, %v692
    %v694 = vrot.slane %v693, 2
    %v695 = vadd.f32 %v693, %v694
    %v696 = vrot.slane %v695, 1
    %v697 = vadd.f32 %v695, %v696
    %vm698 = vcmask 516096
    %699 = vst.msk [vmem:[#allocation3] sm:$0x1] %vm698, %v697
    // Predicated region
    $region54: #{audio_att_net.1} parent=1 // pred_check
      _
    $region55: #{audio_att_net.1} parent=1 // pred_check_branch
      %701 = sbr.rel (0) target = $region57
    $region56: #{audio_att_net.1} parent=1 // pred_region
      %s703 = ssub.s32 16, 16
      %704 = vsyncadd [#allocation4], %s703
      %s706 = sshll.u32 [#allocation3], 4
      %s707 = int_to_ptr.vmem [resolvable:$true] %s706
      %709 = dma.vmem_to_hbm [thread:$0]  %s707, 16, %s13, [#allocation4]
    $region57: #{audio_att_net.1} parent=1 // pred_fallthru
      _
    // Predicated region
    $region58: #{audio_att_net.1} parent=1 // pred_check
      _
    $region59: #{audio_att_net.1} parent=1 // pred_check_branch
      %711 = sbr.rel (0) target = $region61
    $region60: #{audio_att_net.1} parent=1 // pred_region
      %712 = dma.done [#allocation4], 16
    $region61: #{audio_att_net.1} parent=1 // pred_fallthru
      _
    %713 = vsyncpa [#allocation4], 1

</llo_original>
